<compile_context>
chip_gen: v7x
topology: tpu7x:2x2x1
jax: 0.10.0
libtpu: 0.0.40
codegen_flags: <defaults>
</compile_context>

<pallas_src>
import jax
import jax.numpy as jnp
from jax.experimental import pallas as pl
from jax.experimental.pallas import tpu as pltpu

_SUBLANE = 8
_LANE = 128


def _round_up(a: int, b: int) -> int:
    return ((a + b - 1) // b) * b


def _proj_kernel(x_ref, w_ref, b_ref, o_ref):
    # x_ref: (tm, Kp) patch rows; w_ref: (Kp, E) resident weight; b_ref: (1, E) f32.
    acc = jnp.dot(x_ref[...], w_ref[...], preferred_element_type=jnp.float32)
    o_ref[...] = (acc + b_ref[...]).astype(o_ref.dtype)   # bias add stays f32


def _vmem_budgets():
    """(working-set budget, compiler vmem limit) in bytes, per TPU generation."""
    cap = 64 * 1024 * 1024  # conservative fallback = v7x per-TC VMEM
    try:
        info = pltpu.get_tpu_info()
        cap = int(getattr(info, "vmem_capacity_bytes", cap)) or cap
    except Exception:
        pass
    ws_budget = min(cap // 3, 40 * 1024 * 1024)        # ~21 MiB v7x, 40 MiB v5e/v6e
    vmem_limit = min(int(cap * 0.7), 96 * 1024 * 1024)
    return ws_budget, vmem_limit


def patchify2d(x, weight, bias, patch_size, *, tile_m=512, compute_dtype=None,
               out_dtype=None):
    """x: (B, C, H, W) NCHW. weight: (embed_dim, C*ph*pw) (torch Linear layout).
    bias: (embed_dim,). Returns (B, num_patches, embed_dim).

    compute_dtype: optional operand dtype (e.g. jnp.bfloat16 — recommended on
    v6e/v7x: halves activation/weight DMA and runs the MXU at bf16 rate);
    accumulation and the bias add stay in f32.  Default keeps x.dtype for
    bit-accuracy vs. the PyTorch reference.
    out_dtype: output dtype (default x.dtype); pass bf16 for bf16 consumers.
    """
    B, C, H, W = x.shape
    ph, pw = patch_size
    assert H % ph == 0 and W % pw == 0
    gh, gw = H // ph, W // pw
    L = gh * gw
    K = C * ph * pw
    E = weight.shape[0]
    M = B * L

    out_dtype = x.dtype if out_dtype is None else out_dtype
    cdt = x.dtype if compute_dtype is None else compute_dtype

    # --- unfold glue: nn.Unfold flatten order (C, kh, kw) ---------------------
    # Cast first so XLA fuses convert + transpose + reshape into a single copy.
    xc = x.astype(cdt)
    patches = jnp.transpose(
        xc.reshape(B, C, gh, ph, gw, pw), (0, 2, 4, 1, 3, 5)
    ).reshape(M, K)

    w_t = weight.astype(cdt).T                       # (K, E)
    b = bias.astype(jnp.float32).reshape(1, E)       # f32 bias, resident

    # --- contraction-dim padding (only when cheap: <= 12.5% extra) ------------
    Kp = K
    k128 = _round_up(K, _LANE)
    if K % _LANE != 0 and (k128 - K) * 8 <= K:
        Kp = k128
    if Kp != K:
        patches = jnp.pad(patches, ((0, 0), (0, Kp - K)))
        w_t = jnp.pad(w_t, ((0, Kp - K), (0, 0)))

    in_bytes = jnp.dtype(cdt).itemsize
    out_bytes = jnp.dtype(out_dtype).itemsize

    # --- tile-size selection under a per-generation VMEM budget ---------------
    ws_budget, vmem_limit = _vmem_budgets()
    fixed = 2 * (Kp * E * in_bytes + E * 4)          # resident weight + bias
    per_row = 2 * (Kp * in_bytes + E * out_bytes)    # double-buffered x + out rows
    avail = max(ws_budget - fixed, _SUBLANE * per_row)
    tm_fit = max(_SUBLANE, (avail // per_row) // _SUBLANE * _SUBLANE)

    tm = min(tile_m, tm_fit)
    if tm >= M:
        tm = M                                       # single tile == full dim (legal)
    else:
        tm = max(_SUBLANE, (tm // _SUBLANE) * _SUBLANE)

    # v7x megacore: keep >= 2 "parallel" M tiles when there is enough work.
    if tm == M and M >= 1024:
        tm = _round_up(pl.cdiv(M, 2), _SUBLANE)

    nm = pl.cdiv(M, tm)

    cost = pl.CostEstimate(
        flops=2 * M * Kp * E,
        transcendentals=0,
        bytes_accessed=(M * Kp + Kp * E) * in_bytes + E * 4 + M * E * out_bytes,
    )

    out = pl.pallas_call(
        _proj_kernel,
        out_shape=jax.ShapeDtypeStruct((M, E), out_dtype),
        grid=(nm,),
        in_specs=[
            pl.BlockSpec((tm, Kp), lambda i: (i, 0)),   # patch rows: streamed over M
            pl.BlockSpec((Kp, E), lambda i: (0, 0)),    # weight: VMEM-resident
            pl.BlockSpec((1, E), lambda i: (0, 0)),     # f32 bias: VMEM-resident
        ],
        out_specs=pl.BlockSpec((tm, E), lambda i: (i, 0)),
        compiler_params=pltpu.CompilerParams(
            dimension_semantics=("parallel",),
            vmem_limit_bytes=vmem_limit,
        ),
        cost_estimate=cost,
    )(patches, w_t, b)

    return out.reshape(B, L, E)


def _unfold_ref(x, ph, pw):
    B, C, H, W = x.shape
    gh, gw = H // ph, W // pw
    return jnp.transpose(
        x.reshape(B, C, gh, ph, gw, pw), (0, 2, 4, 1, 3, 5)
    ).reshape(B, gh * gw, C * ph * pw)


if __name__ == "__main__":
    # Config-equivalent small shapes
    B, C = 2, 4
    H, W = 16, 16
    ph, pw = 4, 4
    embed_dim = 32

    key = jax.random.PRNGKey(0)
    kx, kw, kb = jax.random.split(key, 3)

    x = jax.random.normal(kx, (B, C, H, W), dtype=jnp.float32)
    fan_in = ph * pw * C
    weight = jax.random.normal(kw, (embed_dim, fan_in), dtype=jnp.float32) * (fan_in ** -0.5)
    bias = jax.random.normal(kb, (embed_dim,), dtype=jnp.float32) * 0.01

    out = patchify2d(x, weight, bias, (ph, pw))
    jax.block_until_ready(out)

    # Pure-JAX reference (same unfold ordering + linear)
    ref = _unfold_ref(x, ph, pw) @ weight.T + bias
    gh, gw = H // ph, W // pw
    assert out.shape == (B, gh * gw, embed_dim)
    assert jnp.allclose(out, ref, atol=1e-4, rtol=1e-4)

    # bf16 operand path (recommended on v6e/v7x), f32 accumulation + bias.
    out_bf16 = patchify2d(x, weight, bias, (ph, pw), compute_dtype=jnp.bfloat16)
    jax.block_until_ready(out_bf16)
    assert jnp.allclose(out_bf16, ref, atol=5e-2, rtol=5e-2)

    # bf16 output write-back (halves output HBM traffic for bf16 consumers).
    out_bf_out = patchify2d(x, weight, bias, (ph, pw),
                            compute_dtype=jnp.bfloat16, out_dtype=jnp.bfloat16)
    jax.block_until_ready(out_bf_out)
    assert out_bf_out.dtype == jnp.bfloat16
    assert jnp.allclose(out_bf_out.astype(jnp.float32), ref, atol=5e-2, rtol=5e-2)

    # Ragged shapes: M=18 (not a multiple of 8), E=40 (not a multiple of 128).
    # Exercises the no-pad / full-dim block path (no M pad, no output slice).
    B2, C2, H2, W2, ph2, pw2, E2 = 2, 3, 12, 12, 4, 4, 40
    kx2, kw2, kb2 = jax.random.split(jax.random.PRNGKey(1), 3)
    x2 = jax.random.normal(kx2, (B2, C2, H2, W2), dtype=jnp.float32)
    fan_in2 = ph2 * pw2 * C2
    weight2 = jax.random.normal(kw2, (E2, fan_in2), dtype=jnp.float32) * (fan_in2 ** -0.5)
    bias2 = jax.random.normal(kb2, (E2,), dtype=jnp.float32) * 0.01

    out2 = patchify2d(x2, weight2, bias2, (ph2, pw2))
    jax.block_until_ready(out2)
    ref2 = _unfold_ref(x2, ph2, pw2) @ weight2.T + bias2
    assert out2.shape == (B2, (H2 // ph2) * (W2 // pw2), E2)
    assert jnp.allclose(out2, ref2, atol=1e-4, rtol=1e-4)

    print("KERNEL_OK")
</pallas_src>

<mosaic_0001>
module attributes {stable_mosaic.version = 11 : i64} {
  func.func @_proj_kernel(%arg0: i32, %arg1: memref<32x64xf32, #tpu.memory_space<vmem>>, %arg2: memref<64x32xf32, #tpu.memory_space<vmem>>, %arg3: memref<1x32xf32, #tpu.memory_space<vmem>>, %arg4: memref<32x32xf32, #tpu.memory_space<vmem>>) attributes {dimension_semantics = [#tpu.dimension_semantics<parallel>], iteration_bounds = array<i64: 1>, scalar_prefetch = 0 : i64, scratch_operands = 0 : i64, tpu.core_type = #tpu.core_type<tc>, window_params = [{transform_indices = @transform_0, window_bounds = array<i64: 32, 64>}, {pipeline_mode = #tpu.pipeline_mode<synchronous>, transform_indices = @transform_1, window_bounds = array<i64: 64, 32>}, {pipeline_mode = #tpu.pipeline_mode<synchronous>, transform_indices = @transform_2, window_bounds = array<i64: 1, 32>}, {transform_indices = @transform_3, window_bounds = array<i64: 32, 32>}]} {
    %c0 = arith.constant 0 : index
    %c0_0 = arith.constant 0 : index
    %0 = vector.load %arg1[%c0, %c0_0] : memref<32x64xf32, #tpu.memory_space<vmem>>, vector<32x64xf32>
    %c0_1 = arith.constant 0 : index
    %c0_2 = arith.constant 0 : index
    %1 = vector.load %arg2[%c0_1, %c0_2] : memref<64x32xf32, #tpu.memory_space<vmem>>, vector<64x32xf32>
    %cst = arith.constant dense<0.000000e+00> : vector<32x32xf32>
    %2 = tpu.matmul %0, %1, %cst {dimension_numbers = #tpu.dot_dimension_numbers<[1], [0], [0], [1], [0, 0, 1, 1], [], []>} : vector<32x64xf32>, vector<64x32xf32>, vector<32x32xf32> -> vector<32x32xf32>
    %c0_3 = arith.constant 0 : index
    %c0_4 = arith.constant 0 : index
    %3 = vector.load %arg3[%c0_3, %c0_4] : memref<1x32xf32, #tpu.memory_space<vmem>>, vector<1x32xf32>
    %4 = vector.broadcast %3 : vector<1x32xf32> to vector<32x32xf32>
    %5 = arith.addf %2, %4 : vector<32x32xf32>
    %c0_5 = arith.constant 0 : index
    %c0_6 = arith.constant 0 : index
    %6 = vector.load %arg4[%c0_5, %c0_6] : memref<32x32xf32, #tpu.memory_space<vmem>>, vector<32x32xf32>
    tpu.vector_store %arg4[%c0_5, %c0_6], %5 {strides = array<i32>} : memref<32x32xf32, #tpu.memory_space<vmem>>, vector<32x32xf32>,
    return
  }
  func.func @transform_0(%arg0: i32) -> (i32, i32) {
    %c0_i32 = arith.constant 0 : i32
    %c0_i32_0 = arith.constant 0 : i32
    return %arg0, %c0_i32 : i32, i32
  }
  func.func @transform_1(%arg0: i32) -> (i32, i32) {
    %c0_i32 = arith.constant 0 : i32
    %c0_i32_0 = arith.constant 0 : i32
    %c0_i32_1 = arith.constant 0 : i32
    return %c0_i32, %c0_i32_0 : i32, i32
  }
  func.func @transform_2(%arg0: i32) -> (i32, i32) {
    %c0_i32 = arith.constant 0 : i32
    %c0_i32_0 = arith.constant 0 : i32
    %c0_i32_1 = arith.constant 0 : i32
    return %c0_i32, %c0_i32_0 : i32, i32
  }
  func.func @transform_3(%arg0: i32) -> (i32, i32) {
    %c0_i32 = arith.constant 0 : i32
    %c0_i32_0 = arith.constant 0 : i32
    return %arg0, %c0_i32 : i32, i32
  }
}

</mosaic_0001>

<llo_original>
// kernel: tpu_custom_call.1
$region0: #{tpu_custom_call.1}
  #allocation0 [shape = 'u32[]', space=smem, size = 0x4, offset = 0x4, fixed_abs, tag = 'smem constant byte address 0x4 - core index']
  #allocation1 [shape = 'u32[144,128]{1,0:T(1,128)}', space=vmem, size = 0x12000, scoped, tag = 'internal scratch']
  %s0 = inlined_call_operand.vmem [shape: f32[32,64], index: 0, kind: input, shape index: {}]
  %s1 = inlined_call_operand.vmem [shape: f32[64,32], index: 1, kind: input, shape index: {}]
  %s2 = inlined_call_operand.vmem [shape: f32[1,32], index: 2, kind: input, shape index: {}]
  %s3 = inlined_call_operand.hbm [shape: f32[32,32], index: 3, kind: output, shape index: {}]
  %s4 = sld [smem:[#allocation0]]
  $region22: #{tpu_custom_call.1} parent=0
    _
  %s6 = ssub.s32 1, %s4
  %s7 = scalar_select 0, %s6, %s4
  $region1: #{tpu_custom_call.1} parent=0
    #allocation2 [shape = 'u8[16384]{0}', space=vmem, size = 0x4000, scoped, tag = 'output window, operand 0, single buffered']
    #allocation3 [shape = 's32[1]{0}', space=sflag, size = 0x4, scoped, tag = 'scoped memory for tpu_custom_call.1']
    %8 = vsyncpa [#allocation3], 0
    // Predicated region
    $region2: #{tpu_custom_call.1} parent=1 // pred_check
      _
    $region3: #{tpu_custom_call.1} parent=1 // pred_check_branch
      %10 = sbr.rel (0) target = $region5
    $region4: #{tpu_custom_call.1} parent=1 // pred_region
      _
    $region5: #{tpu_custom_call.1} parent=1 // pred_fallthru
      _
    // Predicated region
    $region6: #{tpu_custom_call.1} parent=1 // pred_check
      _
    $region7: #{tpu_custom_call.1} parent=1 // pred_check_branch
      %12 = sbr.rel (0) target = $region9
    $region8: #{tpu_custom_call.1} parent=1 // pred_region
      _
    $region9: #{tpu_custom_call.1} parent=1 // pred_fallthru
      _
    // Predicated region
    $region10: #{tpu_custom_call.1} parent=1 // pred_check
      _
    $region11: #{tpu_custom_call.1} parent=1 // pred_check_branch
      %14 = sbr.rel (0) target = $region13
    $region12: #{tpu_custom_call.1} parent=1 // pred_region
      _
    $region13: #{tpu_custom_call.1} parent=1 // pred_fallthru
      _
    %v15 = vld [vmem:[%s0] sm:$0xff]
    %v16 = vld [vmem:[%s0 + $0x8] sm:$0xff]
    %v17 = vld [vmem:[%s0 + $0x10] sm:$0xff]
    %v18 = vld [vmem:[%s0 + $0x18] sm:$0xff]
    %v19 = vld [vmem:[%s1] sm:$0xff]
    %v20 = vld [vmem:[%s1 + $0x8] sm:$0xff]
    %v21 = vld [vmem:[%s1 + $0x10] sm:$0xff]
    %v22 = vld [vmem:[%s1 + $0x18] sm:$0xff]
    %v23 = vld [vmem:[%s1 + $0x20] sm:$0xff]
    %v24 = vld [vmem:[%s1 + $0x28] sm:$0xff]
    %v25 = vld [vmem:[%s1 + $0x30] sm:$0xff]
    %v26 = vld [vmem:[%s1 + $0x38] sm:$0xff]
    %v27 = vld [vmem:[%s2] sm:$0x1]
    %v29 = vlaneseq
    %v30 = vshrl.u32 %v29, 7
    %v31 = vsub.s32 0, %v30
    %v32 = vrot.slane %v27, %v31
    %vm34 = vcmask 523264
    %v36 = vsel %vm34, %v15, 0
    %v39 = vsel %vm34, %v16, 0
    %v42 = vsel %vm34, %v17, 0
    %v45 = vsel %vm34, %v18, 0
    %47 = vmatprep.subr.mxu0 0.0
    %48 = vmatpush1.msra.mxu0 %v19
    %49 = vmatprep.subr.mxu0 0.0
    %50 = vmatpush1.msra.mxu0 %v20
    %51 = vmatprep.subr.mxu0 0.0
    %52 = vmatpush1.msra.mxu0 %v21
    %53 = vmatprep.subr.mxu0 0.0
    %54 = vmatpush1.msra.mxu0 %v22
    %55 = vmatprep.subr.mxu0 0.0
    %56 = vmatpush1.msra.mxu0 %v23
    %57 = vmatprep.subr.mxu0 0.0
    %58 = vmatpush1.msra.mxu0 %v24
    %59 = vmatprep.subr.mxu0 0.0
    %60 = vmatpush1.msra.mxu0 %v25
    %61 = vmatprep.subr.mxu0 0.0
    %62 = vmatpush1.msra.mxu0 %v26
    %63 = vmatprep.subr.mxu0 0.0
    %64 = vmatpush1.msra.mxu0 0.0
    %65 = vmatprep.subr.mxu0 0.0
    %66 = vmatpush1.msra.mxu0 0.0
    %67 = vmatprep.subr.mxu0 0.0
    %68 = vmatpush1.msra.mxu0 0.0
    %69 = vmatprep.subr.mxu0 0.0
    %70 = vmatpush1.msra.mxu0 0.0
    %71 = vmatprep.subr.mxu0 0.0
    %72 = vmatpush1.msra.mxu0 0.0
    %73 = vmatprep.subr.mxu0 0.0
    %74 = vmatpush1.msra.mxu0 0.0
    %75 = vmatprep.subr.mxu0 0.0
    %76 = vmatpush1.msra.mxu0 0.0
    %77 = vmatprep.subr.mxu0 0.0
    %78 = vmatpush1.msra.mxu0 0.0
    %79 = vmatprep.subr.mxu0 0.0
    %80 = vmatpush1.msra.mxu0 0.0
    %81 = vmatprep.subr.mxu0 0.0
    %82 = vmatpush1.msra.mxu0 0.0
    %83 = vmatprep.subr.mxu0 0.0
    %84 = vmatpush1.msra.mxu0 0.0
    %85 = vmatprep.subr.mxu0 0.0
    %86 = vmatpush1.msra.mxu0 0.0
    %87 = vmatprep.subr.mxu0 0.0
    %88 = vmatpush1.msra.mxu0 0.0
    %89 = vmatprep.subr.mxu0 0.0
    %90 = vmatpush1.msra.mxu0 0.0
    %91 = vmatprep.subr.mxu0 0.0
    %92 = vmatpush1.msra.mxu0 0.0
    %93 = vmatprep.subr.mxu0 0.0
    %94 = vmatpush1.msra.mxu0 0.0
    %95 = vmatprep.subr.mxu0 0.0
    %96 = vmatpush1.msra.mxu0 0.0
    %97 = vmatprep.subr.mxu0 0.0
    %98 = vmatpush1.msra.mxu0 0.0
    %99 = vmatprep.subr.mxu0 0.0
    %100 = vmatpush1.msra.mxu0 0.0
    %101 = vmatprep.subr.mxu0 0.0
    %102 = vmatpush1.msra.mxu0 0.0
    %103 = vmatprep.subr.mxu0 0.0
    %104 = vmatpush1.msra.mxu0 0.0
    %105 = vmatprep.subr.mxu0 0.0
    %106 = vmatpush1.msra.mxu0 0.0
    %107 = vmatprep.subr.mxu0 0.0
    %108 = vmatpush1.msra.mxu0 0.0
    %109 = vmatprep.subr.mxu0 0.0
    %110 = vmatpush1.msra.mxu0 0.0
    %111 = vmatprep.mubr.f32.mxu0 0.0
    %112 = vmatmul.mubr.f32.gmra.mrb[0].mxu0 %v36
    %v113 = vpop.f32.mrb[0].mxu0
    %v114 = vadd.f32 %v32, %v113
    %v115 = vpop.f32.mrb[0].mxu0
    %116 = vmatprep.mubr.f32.mxu0 0.0
    %117 = vmatmul.mubr.f32.gmra.mrb[0].mxu0 %v39
    %v118 = vpop.f32.mrb[0].mxu0
    %v119 = vadd.f32 %v32, %v118
    %v120 = vpop.f32.mrb[0].mxu0
    %121 = vmatprep.mubr.f32.mxu0 0.0
    %122 = vmatmul.mubr.f32.gmra.mrb[0].mxu0 %v42
    %v123 = vpop.f32.mrb[0].mxu0
    %v124 = vadd.f32 %v32, %v123
    %v125 = vpop.f32.mrb[0].mxu0
    %126 = vmatprep.mubr.f32.mxu0 0.0
    %127 = vmatmul.mubr.f32.gmra.mrb[0].mxu0 %v45
    %v128 = vpop.f32.mrb[0].mxu0
    %v129 = vadd.f32 %v32, %v128
    %v130 = vpop.f32.mrb[0].mxu0
    %131 = vdwg.mxu0
    %vm132 = vcmask 261120
    %133 = vst.msk [vmem:[#allocation2] sm:$0xff] %vm132, %v114
    %134 = vst.msk [vmem:[#allocation2 + $0x8] sm:$0xff] %vm132, %v119
    %135 = vst.msk [vmem:[#allocation2 + $0x10] sm:$0xff] %vm132, %v124
    %136 = vst.msk [vmem:[#allocation2 + $0x18] sm:$0xff] %vm132, %v129
    // Predicated region
    $region14: #{tpu_custom_call.1} parent=1 // pred_check
      _
    $region15: #{tpu_custom_call.1} parent=1 // pred_check_branch
      %138 = sbr.rel (0) target = $region17
    $region16: #{tpu_custom_call.1} parent=1 // pred_region
      %s140 = ssub.s32 512, 512
      %141 = vsyncadd [#allocation3], %s140
      %s142 = sshll.u32 [#allocation2], 4
      %s143 = int_to_ptr.vmem [resolvable:$true] %s142
      %148 = dma.vmem_to_hbm [thread:$0]  %s143, 512, %s3, [#allocation3], 128, 128, 8
    $region17: #{tpu_custom_call.1} parent=1 // pred_fallthru
      _
    // Predicated region
    $region18: #{tpu_custom_call.1} parent=1 // pred_check
      _
    $region19: #{tpu_custom_call.1} parent=1 // pred_check_branch
      %150 = sbr.rel (0) target = $region21
    $region20: #{tpu_custom_call.1} parent=1 // pred_region
      %151 = dma.done [#allocation3], 512
    $region21: #{tpu_custom_call.1} parent=1 // pred_fallthru
      _
    %152 = vsyncpa [#allocation3], 1

</llo_original>
